<compile_context>
chip_gen: v6e
topology: v6e:2x2x1
jax: 0.10.0
libtpu: 0.0.40
codegen_flags: <defaults>
</compile_context>

<pallas_src>
import jax
import jax.numpy as jnp
from jax.experimental import pallas as pl
from jax.experimental.pallas import tpu as pltpu

_LANE = 128
_SUBLANE_BF16 = 16                     # bf16 packs two rows per sublane
_PALLAS_MIN_MACS = 64 << 20            # ~67M MACs: below this, fused XLA wins
_W_RESIDENT_MAX_BYTES = 8 << 20        # keep W as one VMEM-resident block below this
_VMEM_SOFT_BUDGET = 40 << 20           # conservative vs v7x's 64 MiB physical VMEM


def _round_up(x, m):
    return ((x + m - 1) // m) * m


def _choose_tm(bp16):
    """Pick the batch tile: large, multiple of 16, low over-padding, and
    >= 2 batch tiles when possible (feeds both TensorCores on v7x)."""
    cands = (512, 256, 128, 64, 32, 16)
    # Pass 1: require >= 2 batch tiles and <= 25% padding waste.
    for tm in cands:
        if tm > bp16:
            continue
        padded = _round_up(bp16, tm)
        if padded // tm >= 2 and (padded - bp16) * 4 <= padded:
            return tm, padded
    # Pass 2: largest tile with <= 25% padding waste.
    for tm in cands:
        padded = _round_up(bp16, tm)
        if (padded - bp16) * 4 <= padded:
            return tm, padded
    return 16, _round_up(bp16, 16)


# --------------------------------------------------------------------------
# Kernels
# --------------------------------------------------------------------------
def _dense_relu_kernel_2d(x_ref, w_ref, b_ref, o_ref):
    """Single K step: full contraction per tile, no accumulator scratch."""
    acc = jnp.dot(x_ref[...], w_ref[...], preferred_element_type=jnp.float32)
    o_ref[...] = jnp.maximum(acc + b_ref[...], 0.0).astype(o_ref.dtype)


def _dense_relu_kernel_3d(x_ref, w_ref, b_ref, o_ref, acc_ref):
    """K-tiled: f32 accumulator scratch, reduction over grid axis 2."""
    k = pl.program_id(2)

    @pl.when(k == 0)
    def _():
        acc_ref[...] = jnp.zeros_like(acc_ref)

    acc_ref[...] += jnp.dot(
        x_ref[...], w_ref[...], preferred_element_type=jnp.float32
    )

    @pl.when(k == pl.num_programs(2) - 1)
    def _():
        o_ref[...] = jnp.maximum(acc_ref[...] + b_ref[...], 0.0).astype(o_ref.dtype)


def _dense_relu_pallas(x_p, w_p, b_p, out_dtype, tm, tn, tk, vmem_limit, cost):
    """relu(x_p @ w_p + b_p) on padded, tile-aligned operands."""
    Bp, Kp = x_p.shape
    Np = w_p.shape[1]
    bt, nt, kt = Bp // tm, Np // tn, Kp // tk

    if kt == 1:
        # Single K step (tk == Kp): scratch-free kernel, 2-D grid.  When also
        # nt == 1 the W index map is constant over the whole grid, so W is
        # DMA'd from HBM exactly once and stays VMEM-resident.
        grid = (bt, nt)
        kernel = _dense_relu_kernel_2d
        in_specs = [
            pl.BlockSpec((tm, tk), lambda i, j: (i, 0)),
            pl.BlockSpec((tk, tn), lambda i, j: (0, j)),
            pl.BlockSpec((1, tn), lambda i, j: (0, j)),
        ]
        out_specs = pl.BlockSpec((tm, tn), lambda i, j: (i, j))
        scratch = []
        semantics = ("parallel", "parallel")
    else:
        grid = (bt, nt, kt)                      # reduction axis last
        kernel = _dense_relu_kernel_3d
        in_specs = [
            pl.BlockSpec((tm, tk), lambda i, j, k: (i, k)),
            pl.BlockSpec((tk, tn), lambda i, j, k: (k, j)),
            pl.BlockSpec((1, tn), lambda i, j, k: (0, j)),
        ]
        out_specs = pl.BlockSpec((tm, tn), lambda i, j, k: (i, j))
        scratch = [pltpu.VMEM((tm, tn), jnp.float32)]
        semantics = ("parallel", "parallel", "arbitrary")

    return pl.pallas_call(
        kernel,
        out_shape=jax.ShapeDtypeStruct((Bp, Np), out_dtype),
        grid=grid,
        in_specs=in_specs,
        out_specs=out_specs,
        scratch_shapes=scratch,
        compiler_params=pltpu.CompilerParams(
            dimension_semantics=semantics,
            vmem_limit_bytes=vmem_limit,
        ),
        cost_estimate=cost,
    )(x_p, w_p, b_p)


# --------------------------------------------------------------------------
# Synthetic wrapped model: pred = relu(x @ W + b)
# --------------------------------------------------------------------------
class DenseReluModel:
    """Dense + bias + ReLU, with static weight padding hoisted to __init__."""

    def __init__(self, w, b, use_pallas="auto"):
        self.w = jnp.asarray(w, jnp.float32)
        self.b = jnp.asarray(b, jnp.float32).reshape(1, -1)
        self.K, self.N = self.w.shape
        self.Kp = _round_up(self.K, _LANE)
        self.Np = _round_up(self.N, _LANE)
        # Hoisted (once, not per call): lane-dense zero-padded bf16 weights
        # and an f32 bias row.  Zero-padding keeps the math exact.
        self.w_p = (
            jnp.zeros((self.Kp, self.Np), jnp.bfloat16)
            .at[: self.K, : self.N]
            .set(self.w.astype(jnp.bfloat16))
        )
        self.b_p = (
            jnp.zeros((1, self.Np), jnp.float32).at[:, : self.N].set(self.b)
        )
        self.use_pallas = use_pallas

    def __call__(self, x):
        B, K = x.shape
        assert K == self.K, "input feature dim mismatch"
        use_pallas = self.use_pallas
        if use_pallas == "auto":
            use_pallas = B * K * self.N >= _PALLAS_MIN_MACS
        if not use_pallas:
            # Small shapes: one fused XLA matmul+bias+relu, exact f32.
            return jnp.maximum(x @ self.w + self.b, 0.0).astype(x.dtype)
        return self._pallas_forward(x)

    def _pallas_forward(self, x):
        B, K = x.shape
        out_dtype = x.dtype
        out_bpe = jnp.dtype(out_dtype).itemsize
        Kp, Np = self.Kp, self.Np

        w_bytes = Kp * Np * 2
        resident = w_bytes <= _W_RESIDENT_MAX_BYTES

        bp16 = _round_up(max(B, _SUBLANE_BF16), _SUBLANE_BF16)
        tm, Bp = _choose_tm(bp16)

        if resident:
            # W as one block (fetched once); full K per tile -> no scratch.
            tk, tn = Kp, Np
            # Shrink the batch tile until resident W + double-buffered x/out
            # tiles fit the conservative VMEM budget (v7x: 64 MiB physical).
            while tm > 16 and (
                2 * (w_bytes + tm * Kp * 2 + tm * Np * out_bpe + Np * 4)
                > _VMEM_SOFT_BUDGET
            ):
                tm //= 2
            Bp = _round_up(bp16, tm)
        else:
            # Large W: tile K and N with MXU-filling 512 blocks.
            tk = min(Kp, 512)
            tn = min(Np, 512)

        # Pad x only if needed (skip the extra HBM pass on aligned shapes).
        x_bf = x.astype(jnp.bfloat16)
        if (Bp, Kp) != (B, K):
            x_bf = (
                jnp.zeros((Bp, Kp), jnp.bfloat16).at[:B, :K].set(x_bf)
            )

        n_batch_tiles = Bp // tm
        cost = pl.CostEstimate(
            flops=2 * Bp * Kp * Np,
            transcendentals=0,
            bytes_accessed=int(
                Bp * Kp * 2
                + (w_bytes if resident else w_bytes * n_batch_tiles)
                + Np * 4
                + Bp * Np * out_bpe
            ),
        )

        per_buf = tm * tk * 2 + tk * tn * 2 + tn * 4 + tm * tn * out_bpe
        acc_bytes = 0 if tk == Kp else tm * tn * 4
        vmem_limit = int(
            min(max(2 * per_buf + acc_bytes + (2 << 20), 32 << 20), 48 << 20)
        )

        out = _dense_relu_pallas(
            x_bf, self.w_p, self.b_p, out_dtype, tm, tn, tk, vmem_limit, cost
        )
        if (Bp, Np) != (B, self.N):
            out = out[:B, : self.N]
        return out


# --------------------------------------------------------------------------
# The actual module being ported: a pure pass-through wrapper.
# --------------------------------------------------------------------------
class Tester:
    """JAX/Pallas port of the PyTorch `Tester` wrapper.

    PyTorch:  forward(sample) = self.model(sample.to(self.device))
    JAX:      `.to(device)` -> jax.device_put; the model call is the Pallas
              kernel (or the fused-XLA fallback for tiny shapes).
    """

    def __init__(self, model, device):
        self.model = model
        self.device = device

    def forward(self, sample):
        sample = jax.device_put(sample, self.device)  # mirrors sample.to(device)
        pred = self.model(sample)
        return pred

    __call__ = forward


if __name__ == "__main__":
    key = jax.random.PRNGKey(0)
    k1, k2, k3, k4, k5 = jax.random.split(key, 5)
    device = jax.devices()[0]

    def quantized_ref(x, w, b):
        # f32 reference on bf16-quantized operands (matches kernel numerics).
        xq = x.astype(jnp.bfloat16).astype(jnp.float32)
        wq = w.astype(jnp.bfloat16).astype(jnp.float32)
        return jnp.maximum(xq @ wq + b, 0.0)

    # ---- Case 1: small, deliberately unaligned shapes; force the Pallas
    # path (VMEM-resident W, scratch-free single-K-step kernel), exercising
    # the pad + slice handling.  B=50, K=100, N=200 -> padded 64 x 128 x 256.
    B1, K1, N1 = 50, 100, 200
    x1 = jax.random.normal(k1, (B1, K1), jnp.float32)
    w1 = jax.random.normal(k2, (K1, N1), jnp.float32) * 0.1
    b1 = jax.random.normal(k3, (1, N1), jnp.float32) * 0.1
    model1 = DenseReluModel(w1, b1, use_pallas=True)
    tester1 = Tester(model1, device)
    pred1 = jax.block_until_ready(tester1(x1))
    assert pred1.shape == (B1, N1)
    ref1 = quantized_ref(x1, w1, b1)
    assert jnp.allclose(pred1, ref1, atol=2e-2, rtol=2e-2), "resident path mismatch"

    # ---- Case 2: W too large to keep resident -> K/N-tiled kernel with the
    # f32 accumulator scratch (grid (2, 4, 5), reduction axis last).
    B2, K2, N2 = 64, 2560, 2048
    x2 = jax.random.normal(k4, (B2, K2), jnp.float32)
    w2 = jax.random.normal(k5, (K2, N2), jnp.float32) * 0.02
    b2 = jnp.zeros((1, N2), jnp.float32)
    model2 = DenseReluModel(w2, b2, use_pallas=True)
    pred2 = jax.block_until_ready(Tester(model2, device)(x2))
    assert pred2.shape == (B2, N2)
    ref2 = quantized_ref(x2, w2, b2)
    assert jnp.allclose(pred2, ref2, atol=5e-2, rtol=5e-2), "tiled path mismatch"

    # ---- Case 3: tiny batch, auto dispatch -> fused XLA fallback (exact f32).
    x3 = x1[:8]
    model3 = DenseReluModel(w1, b1)  # use_pallas="auto"
    pred3 = jax.block_until_ready(Tester(model3, device)(x3))
    ref3 = jnp.maximum(x3 @ w1 + b1, 0.0)
    assert jnp.allclose(pred3, ref3, atol=1e-5, rtol=1e-5), "fallback mismatch"

    print("KERNEL_OK")
</pallas_src>

<mosaic_0001>
module attributes {stable_mosaic.version = 11 : i64} {
  func.func @_dense_relu_kernel_2d(%arg0: i32, %arg1: i32, %arg2: memref<32x128xbf16, #tpu.memory_space<vmem>>, %arg3: memref<128x256xbf16, #tpu.memory_space<vmem>>, %arg4: memref<1x256xf32, #tpu.memory_space<vmem>>, %arg5: memref<32x256xf32, #tpu.memory_space<vmem>>) attributes {dimension_semantics = [#tpu.dimension_semantics<parallel>, #tpu.dimension_semantics<parallel>], iteration_bounds = array<i64: 2, 1>, scalar_prefetch = 0 : i64, scratch_operands = 0 : i64, tpu.core_type = #tpu.core_type<tc>, window_params = [{transform_indices = @transform_0, window_bounds = array<i64: 32, 128>}, {transform_indices = @transform_1, window_bounds = array<i64: 128, 256>}, {transform_indices = @transform_2, window_bounds = array<i64: 1, 256>}, {transform_indices = @transform_3, window_bounds = array<i64: 32, 256>}]} {
    %c0 = arith.constant 0 : index
    %c0_0 = arith.constant 0 : index
    %0 = vector.load %arg2[%c0, %c0_0] : memref<32x128xbf16, #tpu.memory_space<vmem>>, vector<32x128xbf16>
    %c0_1 = arith.constant 0 : index
    %c0_2 = arith.constant 0 : index
    %1 = vector.load %arg3[%c0_1, %c0_2] : memref<128x256xbf16, #tpu.memory_space<vmem>>, vector<128x256xbf16>
    %cst = arith.constant dense<0.000000e+00> : vector<32x256xf32>
    %2 = tpu.matmul %0, %1, %cst {dimension_numbers = #tpu.dot_dimension_numbers<[1], [0], [0], [1], [0, 0, 1, 1], [], []>} : vector<32x128xbf16>, vector<128x256xbf16>, vector<32x256xf32> -> vector<32x256xf32>
    %c0_3 = arith.constant 0 : index
    %c0_4 = arith.constant 0 : index
    %3 = vector.load %arg4[%c0_3, %c0_4] : memref<1x256xf32, #tpu.memory_space<vmem>>, vector<1x256xf32>
    %4 = vector.broadcast %3 : vector<1x256xf32> to vector<32x256xf32>
    %5 = arith.addf %2, %4 : vector<32x256xf32>
    %cst_5 = arith.constant 0.000000e+00 : f32
    %6 = vector.broadcast %cst_5 : f32 to vector<32x256xf32>
    %7 = arith.maximumf %5, %6 : vector<32x256xf32>
    %c0_6 = arith.constant 0 : index
    %c0_7 = arith.constant 0 : index
    %8 = vector.load %arg5[%c0_6, %c0_7] : memref<32x256xf32, #tpu.memory_space<vmem>>, vector<32x256xf32>
    tpu.vector_store %arg5[%c0_6, %c0_7], %7 {strides = array<i32>} : memref<32x256xf32, #tpu.memory_space<vmem>>, vector<32x256xf32>,
    return
  }
  func.func @transform_0(%arg0: i32, %arg1: i32) -> (i32, i32) {
    %c0_i32 = arith.constant 0 : i32
    %c0_i32_0 = arith.constant 0 : i32
    return %arg0, %c0_i32 : i32, i32
  }
  func.func @transform_1(%arg0: i32, %arg1: i32) -> (i32, i32) {
    %c0_i32 = arith.constant 0 : i32
    %c0_i32_0 = arith.constant 0 : i32
    return %c0_i32, %arg1 : i32, i32
  }
  func.func @transform_2(%arg0: i32, %arg1: i32) -> (i32, i32) {
    %c0_i32 = arith.constant 0 : i32
    %c0_i32_0 = arith.constant 0 : i32
    return %c0_i32, %arg1 : i32, i32
  }
  func.func @transform_3(%arg0: i32, %arg1: i32) -> (i32, i32) {
    %c0_i32 = arith.constant 0 : i32
    return %arg0, %arg1 : i32, i32
  }
}

</mosaic_0001>

<llo_original>
// kernel: tpu_custom_call.1
$region0: #{tpu_custom_call.1}
  #allocation0 [shape = 'u32[]', space=smem, size = 0x4, offset = 0x4, fixed_abs, tag = 'smem constant byte address 0x4 - core index']
  #allocation1 [shape = 'u32[144,128]{1,0:T(1,128)}', space=vmem, size = 0x12000, scoped, tag = 'internal scratch']
  %s0 = inlined_call_operand.hbm [shape: bf16[64,128], index: 0, kind: input, shape index: {}]
  %s1 = inlined_call_operand.hbm [shape: bf16[128,256], index: 1, kind: input, shape index: {}]
  %s2 = inlined_call_operand.vmem [shape: f32[1,256], index: 2, kind: input, shape index: {}]
  %s3 = inlined_call_operand.hbm [shape: f32[64,256], index: 3, kind: output, shape index: {}]
  %s4 = sld [smem:[#allocation0]]
  $region53: #{tpu_custom_call.1} parent=0
    _
  %s6 = ssub.s32 1, %s4
  %s7 = scalar_select 0, %s6, %s4
  $region1: #{tpu_custom_call.1} parent=0
    #allocation2 [shape = 'u8[16384]{0}', space=vmem, size = 0x4000, scoped, tag = 'input window, operand 0']
    #allocation3 [shape = 's32[2]{0}', space=sflag, size = 0x8, scoped, tag = 'scoped memory for tpu_custom_call.1']
    #allocation4 [shape = 's32[2]{0}', space=sflag, size = 0x8, scoped, tag = 'scoped memory for tpu_custom_call.1']
    #allocation5 [shape = 'u8[65536]{0}', space=vmem, size = 0x10000, scoped, tag = 'input window, operand 1, single buffered']
    #allocation6 [shape = 's32[1]{0}', space=sflag, size = 0x4, scoped, tag = 'scoped memory for tpu_custom_call.1']
    #allocation7 [shape = 'u8[65536]{0}', space=vmem, size = 0x10000, scoped, tag = 'output window, operand 0']
    %8 = vsyncpa [#allocation3], 0
    %s9 = scalar_lea.sflag [#allocation3], 1
    %10 = vsyncpa %s9, 0
    %11 = vsyncpa [#allocation6], 0
    %12 = vsyncpa [#allocation4], 0
    %s13 = scalar_lea.sflag [#allocation4], 1
    %14 = vsyncpa %s13, 0
    loop: start=0, step=1, limit=4
    $region2: #{tpu_custom_call.1} parent=1 // loop_pre_header
      _
    $region3: #{tpu_custom_call.1} parent=1 // loop_header
      %s16 = sphi 0, %s20
      %p17 = scmp.ge.s32.totalorder %s16, 4
      %s23 = sphi 0, %s35
      %s24 = sphi 0, %s31
      %s25 = sphi 0, %s23
      %s26 = sphi 0, %s24
      %s27 = sphi 0, %s25
      %s28 = sphi 0, %s26
      %s38 = sphi 0, %s40
      %s41 = sphi 0, %s38
      %s42 = sphi 0, %s41
      %s58 = sphi 0, %s42
      %s64 = sphi 0, %s66
      %s67 = sphi 0, %s64
      %s68 = sphi 0, %s67
      %s84 = sphi 0, %s68
      %s90 = sphi 0, %s92
      %s93 = sphi 0, %s90
      %s94 = sphi 0, %s93
      %s110 = sphi 0, %s94
      %s118 = sphi 0, %s120
      %s121 = sphi 0, %s118
      %s122 = sphi 0, %s121
      %s138 = sphi 0, %s122
    $region4: #{tpu_custom_call.1} parent=1 // loop_header_branch
      %19 = sbr.rel (%p17) target = $region8
    $region5: #{tpu_custom_call.1} parent=1 // loop_body
      %s21 = ssub.s32 %s16, 1
      %s22 = ssub.s32 %s16, 2
      %s29 = sadd.s32 1, %s24
      %p30 = scmp.ge.s32.totalorder %s29, 1
      %s31 = scalar_select %p30, 0, %s29
      %s32 = sadd.s32 1, %s23
      %s33 = scalar_select %p30, %s32, %s23
      %p34 = scmp.ge.s32.totalorder %s33, 2
      %s35 = scalar_select %p34, 0, %s33
      %s36 = ssub.s32 %s23, %s35
      %p37 = scmp.eq.s32.totalorder %s36, 0
      %s39 = sadd.s32 %s38, 1
      %s40 = scalar_select %p37, %s38, %s39
      %p43 = pneg %p37
      %p44 = scmp.eq.s32.totalorder %s16, 1
      %p45 = por %p43, %p44
      %p46 = scmp.ne.s32.totalorder %s38, %s41
      %p47 = scmp.eq.s32.totalorder %s16, 0
      %p48 = por %p46, %p47
      %p49 = scmp.ne.s32.totalorder %s38, %s41
      %p50 = scmp.eq.s32.totalorder %s21, 1
      %p51 = por %p49, %p50
      %p52 = scmp.ne.s32.totalorder %s41, %s42
      %p53 = scmp.eq.s32.totalorder %s21, 0
      %p54 = por %p52, %p53
      %p55 = scmp.ne.s32.totalorder %s41, %s42
      %p56 = scmp.eq.s32.totalorder %s22, 1
      %p57 = por %p55, %p56
      %p59 = scmp.ne.s32.totalorder %s42, %s58
      %p60 = scmp.eq.s32.totalorder %s22, 0
      %p61 = por %p59, %p60
      %s62 = ssub.s32 %s24, %s31
      %p63 = scmp.eq.s32.totalorder %s62, 0
      %s65 = sadd.s32 %s64, 1
      %s66 = scalar_select %p63, %s64, %s65
      %p69 = pneg %p63
      %p70 = scmp.eq.s32.totalorder %s16, 1
      %p71 = por %p69, %p70
      %p72 = scmp.ne.s32.totalorder %s64, %s67
      %p73 = scmp.eq.s32.totalorder %s16, 0
      %p74 = por %p72, %p73
      %p75 = scmp.ne.s32.totalorder %s64, %s67
      %p76 = scmp.eq.s32.totalorder %s21, 1
      %p77 = por %p75, %p76
      %p78 = scmp.ne.s32.totalorder %s67, %s68
      %p79 = scmp.eq.s32.totalorder %s21, 0
      %p80 = por %p78, %p79
      %p81 = scmp.ne.s32.totalorder %s67, %s68
      %p82 = scmp.eq.s32.totalorder %s22, 1
      %p83 = por %p81, %p82
      %p85 = scmp.ne.s32.totalorder %s68, %s84
      %p86 = scmp.eq.s32.totalorder %s22, 0
      %p87 = por %p85, %p86
      %s88 = ssub.s32 %s24, %s31
      %p89 = scmp.eq.s32.totalorder %s88, 0
      %s91 = sadd.s32 %s90, 1
      %s92 = scalar_select %p89, %s90, %s91
      %p95 = pneg %p89
      %p96 = scmp.eq.s32.totalorder %s16, 1
      %p97 = por %p95, %p96
      %p98 = scmp.ne.s32.totalorder %s90, %s93
      %p99 = scmp.eq.s32.totalorder %s16, 0
      %p100 = por %p98, %p99
      %p101 = scmp.ne.s32.totalorder %s90, %s93
      %p102 = scmp.eq.s32.totalorder %s21, 1
      %p103 = por %p101, %p102
      %p104 = scmp.ne.s32.totalorder %s93, %s94
      %p105 = scmp.eq.s32.totalorder %s21, 0
      %p106 = por %p104, %p105
      %p107 = scmp.ne.s32.totalorder %s93, %s94
      %p108 = scmp.eq.s32.totalorder %s22, 1
      %p109 = por %p107, %p108
      %p111 = scmp.ne.s32.totalorder %s94, %s110
      %p112 = scmp.eq.s32.totalorder %s22, 0
      %p113 = por %p111, %p112
      %s114 = ssub.s32 %s23, %s35
      %s115 = ssub.s32 %s24, %s31
      %s116 = sor.u32 %s114, %s115
      %p117 = scmp.eq.s32.totalorder %s116, 0
      %s119 = sadd.s32 %s118, 1
      %s120 = scalar_select %p117, %s118, %s119
      %p123 = pneg %p117
      %p124 = scmp.eq.s32.totalorder %s16, 1
      %p125 = por %p123, %p124
      %p126 = scmp.ne.s32.totalorder %s118, %s121
      %p127 = scmp.eq.s32.totalorder %s16, 0
      %p128 = por %p126, %p127
      %p129 = scmp.ne.s32.totalorder %s118, %s121
      %p130 = scmp.eq.s32.totalorder %s21, 1
      %p131 = por %p129, %p130
      %p132 = scmp.ne.s32.totalorder %s121, %s122
      %p133 = scmp.eq.s32.totalorder %s21, 0
      %p134 = por %p132, %p133
      %p135 = scmp.ne.s32.totalorder %s121, %s122
      %p136 = scmp.eq.s32.totalorder %s22, 1
      %p137 = por %p135, %p136
      %p139 = scmp.ne.s32.totalorder %s122, %s138
      %p140 = scmp.eq.s32.totalorder %s22, 0
      %p141 = por %p139, %p140
      %p142 = scmp.le.s32.totalorder 1, %s16
      %p143 = scmp.lt.s32.totalorder %s16, 3
      %p144 = pnand %p142, %p143
      %p145 = pneg %p144
      // Predicated region
      $region9: #{tpu_custom_call.1} parent=5 // pred_check
        _
      $region10: #{tpu_custom_call.1} parent=5 // pred_check_branch
        %147 = sbr.rel (%p144) target = $region12
      $region11: #{tpu_custom_call.1} parent=5 // pred_region
        %s148 = ssub.s32 %s16, 1
        // Predicated region
        $region13: #{tpu_custom_call.1} parent=11 // pred_check
          %p149 = pneg %p80
        $region14: #{tpu_custom_call.1} parent=11 // pred_check_branch
          %151 = sbr.rel (%p149) target = $region16
        $region15: #{tpu_custom_call.1} parent=11 // pred_region
          %s152 = smul.u32 2, %s26
          %s154 = ssub.s32 2048, 2048
          %155 = vsyncadd [#allocation6], %s154
          %s156 = smul.addr %s152, 64
          %s157 = scalar_lea.hbm %s1, %s156
          %s158 = sshll.u32 [#allocation5], 4
          %s159 = int_to_ptr.vmem [resolvable:$true] %s158
          %164 = dma.hbm_to_vmem [thread:$0]  %s157, 2048, %s159, [#allocation6], 128, 128, 8
        $region16: #{tpu_custom_call.1} parent=11 // pred_fallthru
          _
        // Predicated region
        $region17: #{tpu_custom_call.1} parent=11 // pred_check
          %p165 = pneg %p106
        $region18: #{tpu_custom_call.1} parent=11 // pred_check_branch
          %167 = sbr.rel (%p165) target = $region20
        $region19: #{tpu_custom_call.1} parent=11 // pred_region
          %s168 = smul.u32 2, %s26
          %p169 = scmp.lt.s32.totalorder %s168, 1
          %s170 = scalar_select %p169, %s168, 1
          %s171 = scalar_lea.vmem %s2, %s170
          %s172 = smul.u32 2, %s26
        $region20: #{tpu_custom_call.1} parent=11 // pred_fallthru
          _
      $region12: #{tpu_custom_call.1} parent=5 // pred_fallthru
        _
      %p173 = scmp.lt.s32.totalorder %s16, 2
      // Predicated region
      $region21: #{tpu_custom_call.1} parent=5 // pred_check
        %p174 = pneg %p173
      $region22: #{tpu_custom_call.1} parent=5 // pred_check_branch
        %176 = sbr.rel (%p174) target = $region24
      $region23: #{tpu_custom_call.1} parent=5 // pred_region
        // Predicated region
        $region25: #{tpu_custom_call.1} parent=23 // pred_check
          %p177 = pneg %p48
        $region26: #{tpu_custom_call.1} parent=23 // pred_check_branch
          %179 = sbr.rel (%p177) target = $region28
        $region27: #{tpu_custom_call.1} parent=23 // pred_region
          %s180 = sand.u32 %s38, 1
          %s181 = scalar_lea.sflag [#allocation3], %s180
          %s182 = sand.u32 %s38, 1
          %s183 = smul.addr %s182, 16
          %s184 = scalar_lea.vmem [#allocation2], %s183
          %s185 = smul.u32 4, %s23
          %s187 = ssub.s32 256, 256
          %188 = vsyncadd %s181, %s187
          %s189 = smul.addr %s185, 64
          %s190 = scalar_lea.hbm %s0, %s189
          %s191 = sshll.u32 %s184, 4
          %s192 = int_to_ptr.vmem [resolvable:$true] %s191
          %197 = dma.hbm_to_vmem [thread:$0]  %s190, 256, %s192, %s181, 64, 64, 4
        $region28: #{tpu_custom_call.1} parent=23 // pred_fallthru
          _
      $region24: #{tpu_custom_call.1} parent=5 // pred_fallthru
        _
      %p198 = scmp.le.s32.totalorder 1, %s16
      %p199 = scmp.lt.s32.totalorder %s16, 3
      %p200 = pnand %p198, %p199
      %p201 = pneg %p200
      // Predicated region
      $region29: #{tpu_custom_call.1} parent=5 // pred_check
        _
      $region30: #{tpu_custom_call.1} parent=5 // pred_check_branch
        %203 = sbr.rel (%p200) target = $region32
      $region31: #{tpu_custom_call.1} parent=5 // pred_region
        %s204 = ssub.s32 %s16, 1
        %s205 = sand.u32 %s41, 1
        %s206 = scalar_lea.sflag [#allocation3], %s205
        %s207 = sand.u32 %s41, 1
        %s208 = smul.addr %s207, 16
        %s209 = scalar_lea.vmem [#allocation2], %s208
        // Predicated region
        $region33: #{tpu_custom_call.1} parent=31 // pred_check
          %p210 = pneg %p54
        $region34: #{tpu_custom_call.1} parent=31 // pred_check_branch
          %212 = sbr.rel (%p210) target = $region36
        $region35: #{tpu_custom_call.1} parent=31 // pred_region
          %213 = dma.done %s206, 256
        $region36: #{tpu_custom_call.1} parent=31 // pred_fallthru
          _
        // Predicated region
        $region37: #{tpu_custom_call.1} parent=31 // pred_check
          %p214 = pneg %p80
        $region38: #{tpu_custom_call.1} parent=31 // pred_check_branch
          %216 = sbr.rel (%p214) target = $region40
        $region39: #{tpu_custom_call.1} parent=31 // pred_region
          %217 = dma.done [#allocation6], 2048
        $region40: #{tpu_custom_call.1} parent=31 // pred_fallthru
          _
        %s218 = sand.u32 %s41, 1
        %s219 = scalar_lea.sflag [#allocation3], %s218
        %s220 = sand.u32 %s41, 1
        %s221 = smul.addr %s220, 16
        %s222 = scalar_lea.vmem [#allocation2], %s221
        %p223 = pneg %p54
        %p224 = pneg %p51
        %p225 = pneg %p80
        %p226 = pneg %p77
        %s227 = smul.u32 2, %s26
        %p228 = scmp.lt.s32.totalorder %s227, 1
        %s229 = scalar_select %p228, %s227, 1
        %s230 = scalar_lea.vmem %s2, %s229
        %p231 = pneg %p106
        %p232 = pneg %p103
        %p233 = pneg %p134
        %p234 = pneg %p131
        %s235 = sand.u32 %s121, 1
        %s236 = scalar_lea.sflag [#allocation4], %s235
        %s237 = sand.u32 %s121, 1
        %s238 = smul.addr %s237, 64
        %s239 = scalar_lea.vmem [#allocation7], %s238
        %s240 = smul.u32 4, %s25
        %s241 = smul.u32 2, %s26
        %s242 = smul.u32 2, %s26
        %p243 = scmp.lt.s32.totalorder %s242, 1
        %s244 = scalar_select %p243, %s242, 1
        %s245 = scalar_lea.vmem %s2, %s244
        %s246 = smul.u32 2, %s26
        %s247 = smul.u32 4, %s25
        %s248 = smul.u32 2, %s26
        %v250 = vld [vmem:[%s209] sm:$0xf]
        %v251 = vld [vmem:[%s209 + $0x4] sm:$0xf]
        %v252 = vld [vmem:[%s209 + $0x8] sm:$0xf]
        %v253 = vld [vmem:[%s209 + $0xc] sm:$0xf]
        %v254 = vld [vmem:[#allocation5] sm:$0xff]
        %v255 = vld [vmem:[#allocation5 + $0x8] sm:$0xff]
        %v256 = vld [vmem:[#allocation5 + $0x10] sm:$0xff]
        %v257 = vld [vmem:[#allocation5 + $0x18] sm:$0xff]
        %v258 = vld [vmem:[#allocation5 + $0x20] sm:$0xff]
        %v259 = vld [vmem:[#allocation5 + $0x28] sm:$0xff]
        %v260 = vld [vmem:[#allocation5 + $0x30] sm:$0xff]
        %v261 = vld [vmem:[#allocation5 + $0x38] sm:$0xff]
        %v262 = vld [vmem:[#allocation5 + $0x40] sm:$0xff]
        %v263 = vld [vmem:[#allocation5 + $0x48] sm:$0xff]
        %v264 = vld [vmem:[#allocation5 + $0x50] sm:$0xff]
        %v265 = vld [vmem:[#allocation5 + $0x58] sm:$0xff]
        %v266 = vld [vmem:[#allocation5 + $0x60] sm:$0xff]
        %v267 = vld [vmem:[#allocation5 + $0x68] sm:$0xff]
        %v268 = vld [vmem:[#allocation5 + $0x70] sm:$0xff]
        %v269 = vld [vmem:[#allocation5 + $0x78] sm:$0xff]
        %v270 = vld [vmem:[%s245] sm:$0x3]
        %v272 = vlaneseq
        %v273 = vshrl.u32 %v272, 7
        %v274 = vsub.s32 0, %v273
        %v275 = vrot.slane %v270, %v274
        %v276 = vlaneseq
        %v277 = vshrl.u32 %v276, 7
        %v278 = vsub.s32 1, %v277
        %v279 = vrot.slane %v270, %v278
        %v286 = vunpack.c.l.b16 %v250
        %v287 = vunpack.c.l.b16 %v251
        %v288 = vunpack.c.l.b16 %v252
        %v289 = vunpack.c.l.b16 %v253
        %v290 = vpack.c.b16 %v287, %v286
        %v291 = vpack.c.b16 %v289, %v288
        %v310 = vunpack.c.l.b16 %v254
        %v311 = vunpack.c.h.b16 %v254
        %v312 = vunpack.c.l.b16 %v255
        %v313 = vunpack.c.h.b16 %v255
        %v314 = vunpack.c.l.b16 %v256
        %v315 = vunpack.c.h.b16 %v256
        %v316 = vunpack.c.l.b16 %v257
        %v317 = vunpack.c.h.b16 %v257
        %v318 = vunpack.c.l.b16 %v258
        %v319 = vunpack.c.h.b16 %v258
        %v320 = vunpack.c.l.b16 %v259
        %v321 = vunpack.c.h.b16 %v259
        %v322 = vunpack.c.l.b16 %v260
        %v323 = vunpack.c.h.b16 %v260
        %v324 = vunpack.c.l.b16 %v261
        %v325 = vunpack.c.h.b16 %v261
        %v326 = vunpack.c.l.b16 %v262
        %v327 = vunpack.c.h.b16 %v262
        %v328 = vunpack.c.l.b16 %v263
        %v329 = vunpack.c.h.b16 %v263
        %v330 = vunpack.c.l.b16 %v264
        %v331 = vunpack.c.h.b16 %v264
        %v332 = vunpack.c.l.b16 %v265
        %v333 = vunpack.c.h.b16 %v265
        %v334 = vunpack.c.l.b16 %v266
        %v335 = vunpack.c.h.b16 %v266
        %v336 = vunpack.c.l.b16 %v267
        %v337 = vunpack.c.h.b16 %v267
        %v338 = vunpack.c.l.b16 %v268
        %v339 = vunpack.c.h.b16 %v268
        %v340 = vunpack.c.l.b16 %v269
        %v341 = vunpack.c.h.b16 %v269
        %v342 = vpack.c.b16 %v312, %v310
        %v343 = vpack.c.b16 %v313, %v311
        %v344 = vpack.c.b16 %v316, %v314
        %v345 = vpack.c.b16 %v317, %v315
        %v346 = vpack.c.b16 %v320, %v318
        %v347 = vpack.c.b16 %v321, %v319
        %v348 = vpack.c.b16 %v324, %v322
        %v349 = vpack.c.b16 %v325, %v323
        %v350 = vpack.c.b16 %v328, %v326
        %v351 = vpack.c.b16 %v329, %v327
        %v352 = vpack.c.b16 %v332, %v330
        %v353 = vpack.c.b16 %v333, %v331
        %v354 = vpack.c.b16 %v336, %v334
        %v355 = vpack.c.b16 %v337, %v335
        %v356 = vpack.c.b16 %v340, %v338
        %v357 = vpack.c.b16 %v341, %v339
        %374 = vmatprep.subr.bf16.mxu0 %v357
        %375 = vmatpush1.bf16.msra.mxu0 %v356
        %376 = vmatprep.subr.bf16.mxu0 %v355
        %377 = vmatpush1.bf16.msra.mxu0 %v354
        %378 = vmatprep.subr.bf16.mxu0 %v353
        %379 = vmatpush1.bf16.msra.mxu0 %v352
        %380 = vmatprep.subr.bf16.mxu0 %v351
        %381 = vmatpush1.bf16.msra.mxu0 %v350
        %382 = vmatprep.subr.bf16.mxu0 %v349
        %383 = vmatpush1.bf16.msra.mxu0 %v348
        %384 = vmatprep.subr.bf16.mxu0 %v347
        %385 = vmatpush1.bf16.msra.mxu0 %v346
        %386 = vmatprep.subr.bf16.mxu0 %v345
        %387 = vmatpush1.bf16.msra.mxu0 %v344
        %388 = vmatprep.subr.bf16.mxu0 %v343
        %389 = vmatpush1.bf16.msra.mxu0 %v342
        %390 = vmatprep.subr.bf16.mxu0 0
        %391 = vmatpush2.bf16.msra.mxu0 0
        %392 = vmatprep.subr.bf16.mxu0 0
        %393 = vmatpush2.bf16.msra.mxu0 0
        %394 = vmatprep.subr.bf16.mxu0 0
        %395 = vmatpush2.bf16.msra.mxu0 0
        %396 = vmatprep.subr.bf16.mxu0 0
        %397 = vmatpush2.bf16.msra.mxu0 0
        %398 = vmatprep.subr.bf16.mxu0 0
        %399 = vmatpush2.bf16.msra.mxu0 0
        %400 = vmatprep.subr.bf16.mxu0 0
        %401 = vmatpush2.bf16.msra.mxu0 0
        %402 = vmatprep.subr.bf16.mxu0 0
        %403 = vmatpush2.bf16.msra.mxu0 0
        %404 = vmatprep.subr.bf16.mxu0 0
        %405 = vmatpush2.bf16.msra.mxu0 0
        %406 = vmatprep.mubr.bf16.mxu0 0
        %407 = vmatmul.mubr.bf16.gmra.mxu0 %v290
        %v408 = vpop.f32.mrf.mxu0
        %v409 = vadd.f32 %v275, %v408
        %v410 = vpop.f32.mrf.mxu0
        %v411 = vadd.f32 %v279, %v410
        %v412 = vpop.f32.mrf.mxu0
        %v413 = vadd.f32 %v275, %v412
        %v414 = vpop.f32.mrf.mxu0
        %v415 = vadd.f32 %v279, %v414
        %416 = vmatprep.mubr.bf16.mxu0 0
        %417 = vmatmul.mubr.bf16.gmra.mxu0 %v291
        %v418 = vpop.f32.mrf.mxu0
        %v419 = vadd.f32 %v275, %v418
        %v420 = vpop.f32.mrf.mxu0
        %v421 = vadd.f32 %v279, %v420
        %v422 = vpop.f32.mrf.mxu0
        %v423 = vadd.f32 %v275, %v422
        %v424 = vpop.f32.mrf.mxu0
        %v425 = vadd.f32 %v279, %v424
        %426 = vdwg.mxu0
        %v427 = vmax.f32 %v409, 0.0
        %v428 = vmax.f32 %v411, 0.0
        %v429 = vmax.f32 %v413, 0.0
        %v430 = vmax.f32 %v415, 0.0
        %v431 = vmax.f32 %v419, 0.0
        %v432 = vmax.f32 %v421, 0.0
        %v433 = vmax.f32 %v423, 0.0
        %v434 = vmax.f32 %v425, 0.0
        %435 = vst [vmem:[%s239] sm:$0xff] %v427
        %436 = vst [vmem:[%s239 + $0x8] sm:$0xff] %v428
        %437 = vst [vmem:[%s239 + $0x10] sm:$0xff] %v429
        %438 = vst [vmem:[%s239 + $0x18] sm:$0xff] %v430
        %439 = vst [vmem:[%s239 + $0x20] sm:$0xff] %v431
        %440 = vst [vmem:[%s239 + $0x28] sm:$0xff] %v432
        %441 = vst [vmem:[%s239 + $0x30] sm:$0xff] %v433
        %442 = vst [vmem:[%s239 + $0x38] sm:$0xff] %v434
        %s443 = sand.u32 %s121, 1
        %s444 = scalar_lea.sflag [#allocation4], %s443
        %s445 = sand.u32 %s121, 1
        %s446 = smul.addr %s445, 64
        %s447 = scalar_lea.vmem [#allocation7], %s446
        // Predicated region
        $region41: #{tpu_custom_call.1} parent=31 // pred_check
          %p448 = pneg %p131
        $region42: #{tpu_custom_call.1} parent=31 // pred_check_branch
          %450 = sbr.rel (%p448) target = $region44
        $region43: #{tpu_custom_call.1} parent=31 // pred_region
          %s451 = smul.u32 4, %s25
          %s452 = smul.u32 2, %s26
          %s454 = ssub.s32 1024, 1024
          %455 = vsyncadd %s444, %s454
          %s456 = smul.addr %s451, 2
          %s457 = sadd.s32 %s452, %s456
          %s458 = smul.addr %s457, 128
          %s459 = scalar_lea.hbm %s3, %s458
          %s460 = sshll.u32 %s447, 4
          %s461 = int_to_ptr.vmem [resolvable:$true] %s460
          %466 = dma.vmem_to_hbm [thread:$0]  %s461, 1024, %s459, %s444, 256, 256, 16
        $region44: #{tpu_custom_call.1} parent=31 // pred_fallthru
          _
      $region32: #{tpu_custom_call.1} parent=5 // pred_fallthru
        _
      %p467 = scmp.le.s32.totalorder 2, %s16
      // Predicated region
      $region45: #{tpu_custom_call.1} parent=5 // pred_check
        %p468 = pneg %p467
      $region46: #{tpu_custom_call.1} parent=5 // pred_check_branch
        %470 = sbr.rel (%p468) target = $region48
      $region47: #{tpu_custom_call.1} parent=5 // pred_region
        %s471 = ssub.s32 %s16, 2
        // Predicated region
        $region49: #{tpu_custom_call.1} parent=47 // pred_check
          %p472 = pneg %p137
        $region50: #{tpu_custom_call.1} parent=47 // pred_check_branch
          %474 = sbr.rel (%p472) target = $region52
        $region51: #{tpu_custom_call.1} parent=47 // pred_region
          %s475 = sand.u32 %s122, 1
          %s476 = scalar_lea.sflag [#allocation4], %s475
          %s477 = sand.u32 %s122, 1
          %s478 = smul.addr %s477, 64
          %s479 = scalar_lea.vmem [#allocation7], %s478
          %480 = dma.done %s476, 1024
        $region52: #{tpu_custom_call.1} parent=47 // pred_fallthru
          _
      $region48: #{tpu_custom_call.1} parent=5 // pred_fallthru
        _
    $region6: #{tpu_custom_call.1} parent=1 // loop_footer
      %s20 = sadd.s32 1, %s16
    $region7: #{tpu_custom_call.1} parent=1 // loop_footer_branch
      %15 = sbr.rel target = $region3
    $region8: #{tpu_custom_call.1} parent=1 // loop_exit
      _
    %481 = vsyncpa [#allocation3], 1
    %s482 = scalar_lea.sflag [#allocation3], 1
    %483 = vsyncpa %s482, 1
    %484 = vsyncpa [#allocation6], 1
    %485 = vsyncpa [#allocation4], 1
    %s486 = scalar_lea.sflag [#allocation4], 1
    %487 = vsyncpa %s486, 1

</llo_original>
